<compile_context>
chip_gen: v6e
topology: v6e:2x2x1
jax: 0.10.0
libtpu: 0.0.40
codegen_flags: <defaults>
</compile_context>

<pallas_src>
import functools

import jax
import jax.numpy as jnp
from jax.experimental import pallas as pl
from jax.experimental.pallas import tpu as pltpu

_LANE = 128
_SUBLANE = 8
_MIN_SPLIT_BYTES = 2 * 1024 * 1024   # above this, force >= 2 grid steps (v7x TCs)


@functools.lru_cache(maxsize=None)
def _tpu_budgets():
    """(per-array tile byte budget, scoped vmem_limit_bytes), generation-aware."""
    vmem = None
    try:
        info = pltpu.get_tpu_info()
        vmem = getattr(info, "vmem_capacity_bytes", None)
    except Exception:  # pragma: no cover - non-TPU / older runtimes
        vmem = None
    if vmem is not None and vmem >= 100 * 1024 * 1024:
        # v5e / v6e: 128 MiB physical VMEM, HBM-bound -> large tiles.
        return 16 * 1024 * 1024, 96 * 1024 * 1024
    if vmem is not None:
        # v7x: 64 MiB physical VMEM -> smaller ceiling, still big DMA steps.
        return 10 * 1024 * 1024, 48 * 1024 * 1024
    # Unknown backend: settings that fit every generation.
    return 8 * 1024 * 1024, 48 * 1024 * 1024


def _round_up(x, m):
    return (x + m - 1) // m * m


def _choose_tiles(B, L, itemsize, tile_bytes):
    """Pick (TB, TL): lane-dense tiles whose double-buffered set fits VMEM."""
    max_elems = max(_SUBLANE * _LANE, tile_bytes // itemsize)
    total = B * L
    if total <= max_elems:
        # Whole problem fits in one block.  If it is non-trivial, still split
        # into 2 chunks so both v7x TensorCores get a grid step.
        if total * itemsize > _MIN_SPLIT_BYTES:
            if L >= 2 * _LANE:
                return B, _round_up((L + 1) // 2, _LANE)
            if B >= 2 * _SUBLANE:
                return _round_up((B + 1) // 2, _SUBLANE), L
        return B, L
    if L <= max_elems // _SUBLANE:
        # Keep the full flattened plane per step; tile the batch axis.
        tb = max(_SUBLANE, (max_elems // L) // _SUBLANE * _SUBLANE)
        return tb, L
    # Huge plane: tile the flattened plane in 128-lane multiples.
    tb = B if B < _SUBLANE else _SUBLANE
    tl = max(_LANE, (max_elems // _SUBLANE) // _LANE * _LANE)
    return tb, tl


def _bce_perm_kernel(pred_ref, gt_ref, col_ref, pns_ref, gns_ref, out_ref,
                     *, n2, tl):
    """Masked BCE partial sum for one (batch-tile, lane-chunk) block."""
    gl = pl.program_id(1)

    # Tiles stream from HBM in their native dtype; upcast on-chip only.
    pred = pred_ref[...].astype(jnp.float32)           # (TB, TL)
    gt = gt_ref[...].astype(jnp.float32)                # (TB, TL)

    # Flattened plane index of each lane (no div/mod in-kernel).
    flat = jax.lax.broadcasted_iota(jnp.int32, pred.shape, 1) + gl * tl
    col = col_ref[...]                                  # (1, TL) int32, precomputed

    n_rows = pns_ref[...]                               # (TB, 1) int32
    n_cols = gns_ref[...]                               # (TB, 1) int32
    # row < pred_ns  <=>  flat < pred_ns * N2   (exact; row = flat // N2).
    mask = (flat < n_rows * n2) & (col < n_cols)

    # torch F.binary_cross_entropy clamps the log terms at -100.
    log_p = jnp.maximum(jnp.log(pred), -100.0)
    log_1mp = jnp.maximum(jnp.log(1.0 - pred), -100.0)
    # BCE = -(gt*log_p + (1-gt)*log_1mp) = -(gt*(log_p - log_1mp) + log_1mp);
    # the single negate is applied to the scalar sum in the wrapper.
    term = gt * (log_p - log_1mp) + log_1mp

    # Scalar SMEM output: one f32 per grid step, no VMEM/HBM tile writeback.
    out_ref[0, 0] = jnp.sum(jnp.where(mask, term, 0.0))


@jax.jit
def cross_entropy_perm_loss(pred_perm, gt_perm, pred_ns, gt_ns):
    """Pallas implementation of the permutation cross-entropy loss."""
    B, N1, N2 = pred_perm.shape
    L = N1 * N2
    assert N1 * N2 < 2**31, "flattened plane index would overflow int32"
    itemsize = jnp.dtype(pred_perm.dtype).itemsize

    # Lane-dense layout (free reshape of contiguous trailing dims).
    pred2d = pred_perm.reshape(B, L)
    gt2d = gt_perm.reshape(B, L)
    pns = pred_ns.astype(jnp.int32)
    gns = gt_ns.astype(jnp.int32)

    tile_bytes, vmem_limit = _tpu_budgets()
    TB, TL = _choose_tiles(B, L, itemsize, tile_bytes)
    GB = pl.cdiv(B, TB)
    GL = pl.cdiv(L, TL)
    B_pad, L_pad = GB * TB, GL * TL

    if B_pad != B or L_pad != L:
        # Padded entries are fully masked: padded pred_ns/gt_ns are 0 and
        # padded flat indices are >= N1*N2 >= pred_ns*N2.  0.5 keeps log finite.
        pred2d = jnp.pad(pred2d, ((0, B_pad - B), (0, L_pad - L)),
                         constant_values=0.5)
        gt2d = jnp.pad(gt2d, ((0, B_pad - B), (0, L_pad - L)))
    if B_pad != B:
        pns_p = jnp.pad(pns, (0, B_pad - B))
        gns_p = jnp.pad(gns, (0, B_pad - B))
    else:
        pns_p, gns_p = pns, gns

    # Precomputed column index of each flattened position (removes in-kernel mod).
    col_idx = (jnp.arange(L_pad, dtype=jnp.int32) % N2).reshape(1, L_pad)

    kernel = functools.partial(_bce_perm_kernel, n2=N2, tl=TL)

    partials = pl.pallas_call(
        kernel,
        out_shape=jax.ShapeDtypeStruct((GB, GL), jnp.float32),
        grid=(GB, GL),
        in_specs=[
            pl.BlockSpec((TB, TL), lambda gb, gl: (gb, gl)),
            pl.BlockSpec((TB, TL), lambda gb, gl: (gb, gl)),
            pl.BlockSpec((1, TL), lambda gb, gl: (0, gl)),
            pl.BlockSpec((TB, 1), lambda gb, gl: (gb, 0)),
            pl.BlockSpec((TB, 1), lambda gb, gl: (gb, 0)),
        ],
        out_specs=pl.BlockSpec((1, 1), lambda gb, gl: (gb, gl),
                               memory_space=pltpu.SMEM),
        compiler_params=pltpu.CompilerParams(
            dimension_semantics=("parallel", "parallel"),
            vmem_limit_bytes=vmem_limit),
    )(pred2d, gt2d, col_idx, pns_p.reshape(B_pad, 1), gns_p.reshape(B_pad, 1))

    loss = -jnp.sum(partials)
    n_sum = jnp.sum(pns).astype(jnp.float32)
    # TODO(synk): the torch module's debug-only range asserts on pred/gt (values
    # in [0,1]) and the implicit pred_ns<=N1 / gt_ns<=N2 invariant are not checked.
    return loss / n_sum


def _reference(pred_perm, gt_perm, pred_ns, gt_ns):
    """Pure-JAX reference mirroring the PyTorch loop."""
    pred_perm = pred_perm.astype(jnp.float32)
    B, N1, N2 = pred_perm.shape
    loss = 0.0
    n_sum = 0.0
    for b in range(B):
        p = pred_perm[b, : int(pred_ns[b]), : int(gt_ns[b])]
        g = gt_perm[b, : int(pred_ns[b]), : int(gt_ns[b])].astype(jnp.float32)
        log_p = jnp.maximum(jnp.log(p), -100.0)
        log_1mp = jnp.maximum(jnp.log(1.0 - p), -100.0)
        loss = loss + jnp.sum(-(g * log_p + (1.0 - g) * log_1mp))
        n_sum = n_sum + float(pred_ns[b])
    return loss / n_sum


if __name__ == "__main__":
    key = jax.random.PRNGKey(0)
    B, N1, N2 = 2, 16, 16

    k1, k2 = jax.random.split(key)
    # pred_perm: doubly-stochastic-ish values in (0, 1) (row softmax).
    logits = jax.random.normal(k1, (B, N1, N2), dtype=jnp.float32)
    pred_perm = jax.nn.softmax(logits, axis=-1)
    # gt_perm: one-hot permutation matrices (values in {0, 1}).
    perms = jnp.stack(
        [jax.random.permutation(jax.random.fold_in(k2, b), N2)[:N1]
         for b in range(B)])
    gt_perm = jax.nn.one_hot(perms, N2, dtype=jnp.float32)

    pred_ns = jnp.array([12, 16], dtype=jnp.int32)
    gt_ns = jnp.array([10, 16], dtype=jnp.int32)

    out = cross_entropy_perm_loss(pred_perm, gt_perm, pred_ns, gt_ns)
    out = jax.block_until_ready(out)

    ref = _reference(pred_perm, gt_perm, pred_ns, gt_ns)
    assert jnp.allclose(out, ref, rtol=1e-5, atol=1e-5), (out, ref)

    print("KERNEL_OK")
</pallas_src>

<mosaic_0001>
module attributes {stable_mosaic.version = 11 : i64} {
  func.func @_bce_perm_kernel(%arg0: i32, %arg1: i32, %arg2: memref<2x256xf32, #tpu.memory_space<vmem>>, %arg3: memref<2x256xf32, #tpu.memory_space<vmem>>, %arg4: memref<1x256xi32, #tpu.memory_space<vmem>>, %arg5: memref<2x1xi32, #tpu.memory_space<vmem>>, %arg6: memref<2x1xi32, #tpu.memory_space<vmem>>, %arg7: memref<1x1xf32, #tpu.memory_space<smem>>) attributes {dimension_semantics = [#tpu.dimension_semantics<parallel>, #tpu.dimension_semantics<parallel>], iteration_bounds = array<i64: 1, 1>, scalar_prefetch = 0 : i64, scratch_operands = 0 : i64, tpu.core_type = #tpu.core_type<tc>, window_params = [{transform_indices = @transform_0, window_bounds = array<i64: 2, 256>}, {transform_indices = @transform_1, window_bounds = array<i64: 2, 256>}, {transform_indices = @transform_2, window_bounds = array<i64: 1, 256>}, {transform_indices = @transform_3, window_bounds = array<i64: 2, 1>}, {transform_indices = @transform_4, window_bounds = array<i64: 2, 1>}, {transform_indices = @transform_5, window_bounds = array<i64: 1, 1>}]} {
    %c0 = arith.constant 0 : index
    %c0_0 = arith.constant 0 : index
    %0 = vector.load %arg2[%c0, %c0_0] : memref<2x256xf32, #tpu.memory_space<vmem>>, vector<2x256xf32>
    %c0_1 = arith.constant 0 : index
    %c0_2 = arith.constant 0 : index
    %1 = vector.load %arg3[%c0_1, %c0_2] : memref<2x256xf32, #tpu.memory_space<vmem>>, vector<2x256xf32>
    %2 = tpu.iota {dimensions = array<i32: 1>} : vector<2x256xi32>
    %c256_i32 = arith.constant 256 : i32
    %3 = arith.muli %arg1, %c256_i32 : i32
    %4 = vector.broadcast %3 : i32 to vector<2x256xi32>
    %5 = arith.addi %2, %4 : vector<2x256xi32>
    %c0_3 = arith.constant 0 : index
    %c0_4 = arith.constant 0 : index
    %6 = vector.load %arg4[%c0_3, %c0_4] : memref<1x256xi32, #tpu.memory_space<vmem>>, vector<1x256xi32>
    %c0_5 = arith.constant 0 : index
    %c0_6 = arith.constant 0 : index
    %7 = vector.load %arg5[%c0_5, %c0_6] : memref<2x1xi32, #tpu.memory_space<vmem>>, vector<2x1xi32>
    %c0_7 = arith.constant 0 : index
    %c0_8 = arith.constant 0 : index
    %8 = vector.load %arg6[%c0_7, %c0_8] : memref<2x1xi32, #tpu.memory_space<vmem>>, vector<2x1xi32>
    %c16_i32 = arith.constant 16 : i32
    %9 = vector.broadcast %c16_i32 : i32 to vector<2x1xi32>
    %10 = arith.muli %7, %9 : vector<2x1xi32>
    %11 = vector.broadcast %10 : vector<2x1xi32> to vector<2x256xi32>
    %12 = arith.cmpi slt, %5, %11 : vector<2x256xi32>
    %13 = vector.broadcast %6 : vector<1x256xi32> to vector<2x256xi32>
    %14 = vector.broadcast %8 : vector<2x1xi32> to vector<2x256xi32>
    %15 = arith.cmpi slt, %13, %14 : vector<2x256xi32>
    %16 = arith.andi %12, %15 : vector<2x256xi1>
    %17 = math.log %0 : vector<2x256xf32>
    %cst = arith.constant -1.000000e+02 : f32
    %18 = vector.broadcast %cst : f32 to vector<2x256xf32>
    %19 = arith.maximumf %17, %18 : vector<2x256xf32>
    %cst_9 = arith.constant 1.000000e+00 : f32
    %20 = vector.broadcast %cst_9 : f32 to vector<2x256xf32>
    %21 = arith.subf %20, %0 : vector<2x256xf32>
    %22 = math.log %21 : vector<2x256xf32>
    %cst_10 = arith.constant -1.000000e+02 : f32
    %23 = vector.broadcast %cst_10 : f32 to vector<2x256xf32>
    %24 = arith.maximumf %22, %23 : vector<2x256xf32>
    %25 = arith.subf %19, %24 : vector<2x256xf32>
    %26 = arith.mulf %1, %25 : vector<2x256xf32>
    %27 = arith.addf %26, %24 : vector<2x256xf32>
    %cst_11 = arith.constant 0.000000e+00 : f32
    %28 = vector.broadcast %cst_11 : f32 to vector<2x256xf32>
    %29 = arith.select %16, %27, %28 : vector<2x256xi1>, vector<2x256xf32>
    %30 = vector.shape_cast %29 : vector<2x256xf32> to vector<1x2x256xf32>
    %cst_12 = arith.constant dense<0.000000e+00> : vector<1xf32>
    %31 = vector.multi_reduction <add>, %30, %cst_12 [1, 2] : vector<1x2x256xf32> to vector<1xf32>
    %32 = vector.shape_cast %31 : vector<1xf32> to vector<1x1x1xf32>
    %33 = vector.extract %32[0, 0, 0] : f32 from vector<1x1x1xf32>
    %c0_13 = arith.constant 0 : index
    %c0_14 = arith.constant 0 : index
    %34 = memref.load %arg7[%c0_13, %c0_14] : memref<1x1xf32, #tpu.memory_space<smem>>
    memref.store %33, %arg7[%c0_13, %c0_14] : memref<1x1xf32, #tpu.memory_space<smem>>
    return
  }
  func.func @transform_0(%arg0: i32, %arg1: i32) -> (i32, i32) {
    %c0_i32 = arith.constant 0 : i32
    return %arg0, %arg1 : i32, i32
  }
  func.func @transform_1(%arg0: i32, %arg1: i32) -> (i32, i32) {
    %c0_i32 = arith.constant 0 : i32
    return %arg0, %arg1 : i32, i32
  }
  func.func @transform_2(%arg0: i32, %arg1: i32) -> (i32, i32) {
    %c0_i32 = arith.constant 0 : i32
    %c0_i32_0 = arith.constant 0 : i32
    return %c0_i32, %arg1 : i32, i32
  }
  func.func @transform_3(%arg0: i32, %arg1: i32) -> (i32, i32) {
    %c0_i32 = arith.constant 0 : i32
    %c0_i32_0 = arith.constant 0 : i32
    return %arg0, %c0_i32 : i32, i32
  }
  func.func @transform_4(%arg0: i32, %arg1: i32) -> (i32, i32) {
    %c0_i32 = arith.constant 0 : i32
    %c0_i32_0 = arith.constant 0 : i32
    return %arg0, %c0_i32 : i32, i32
  }
  func.func @transform_5(%arg0: i32, %arg1: i32) -> (i32, i32) {
    %c0_i32 = arith.constant 0 : i32
    return %arg0, %arg1 : i32, i32
  }
}

</mosaic_0001>

<llo_original>
// kernel: cross_entropy_perm_loss.1
$region0: #{cross_entropy_perm_loss.1}
  #allocation0 [shape = 'u32[]', space=smem, size = 0x4, offset = 0x4, fixed_abs, tag = 'smem constant byte address 0x4 - core index']
  #allocation1 [shape = 'u32[144,128]{1,0:T(1,128)}', space=vmem, size = 0x12000, scoped, tag = 'internal scratch']
  %s0 = inlined_call_operand.vmem [shape: f32[2,256], index: 0, kind: input, shape index: {}]
  %s1 = inlined_call_operand.vmem [shape: f32[2,256], index: 1, kind: input, shape index: {}]
  %s2 = inlined_call_operand.vmem [shape: s32[1,256], index: 2, kind: input, shape index: {}]
  %s3 = inlined_call_operand.vmem [shape: s32[2,1], index: 3, kind: input, shape index: {}]
  %s4 = inlined_call_operand.vmem [shape: s32[2,1], index: 4, kind: input, shape index: {}]
  %s5 = inlined_call_operand.hbm [shape: f32[1,1], index: 5, kind: output, shape index: {}]
  %s6 = sld [smem:[#allocation0]]
  $region30: #{cross_entropy_perm_loss.1} parent=0
    _
  %s8 = ssub.s32 1, %s6
  %s9 = scalar_select 0, %s8, %s6
  $region1: #{cross_entropy_perm_loss.1} parent=0
    #allocation2 [shape = 'u8[512]{0}', space=smem, size = 0x200, scoped, tag = 'output window, operand 0, single buffered']
    #allocation3 [shape = 's32[1]{0}', space=sflag, size = 0x4, scoped, tag = 'scoped memory for cross_entropy_perm_loss.1']
    %10 = vsyncpa [#allocation3], 0
    // Predicated region
    $region2: #{cross_entropy_perm_loss.1} parent=1 // pred_check
      _
    $region3: #{cross_entropy_perm_loss.1} parent=1 // pred_check_branch
      %12 = sbr.rel (0) target = $region5
    $region4: #{cross_entropy_perm_loss.1} parent=1 // pred_region
      _
    $region5: #{cross_entropy_perm_loss.1} parent=1 // pred_fallthru
      _
    // Predicated region
    $region6: #{cross_entropy_perm_loss.1} parent=1 // pred_check
      _
    $region7: #{cross_entropy_perm_loss.1} parent=1 // pred_check_branch
      %14 = sbr.rel (0) target = $region9
    $region8: #{cross_entropy_perm_loss.1} parent=1 // pred_region
      _
    $region9: #{cross_entropy_perm_loss.1} parent=1 // pred_fallthru
      _
    // Predicated region
    $region10: #{cross_entropy_perm_loss.1} parent=1 // pred_check
      _
    $region11: #{cross_entropy_perm_loss.1} parent=1 // pred_check_branch
      %16 = sbr.rel (0) target = $region13
    $region12: #{cross_entropy_perm_loss.1} parent=1 // pred_region
      _
    $region13: #{cross_entropy_perm_loss.1} parent=1 // pred_fallthru
      _
    // Predicated region
    $region14: #{cross_entropy_perm_loss.1} parent=1 // pred_check
      _
    $region15: #{cross_entropy_perm_loss.1} parent=1 // pred_check_branch
      %18 = sbr.rel (0) target = $region17
    $region16: #{cross_entropy_perm_loss.1} parent=1 // pred_region
      _
    $region17: #{cross_entropy_perm_loss.1} parent=1 // pred_fallthru
      _
    // Predicated region
    $region18: #{cross_entropy_perm_loss.1} parent=1 // pred_check
      _
    $region19: #{cross_entropy_perm_loss.1} parent=1 // pred_check_branch
      %20 = sbr.rel (0) target = $region21
    $region20: #{cross_entropy_perm_loss.1} parent=1 // pred_region
      _
    $region21: #{cross_entropy_perm_loss.1} parent=1 // pred_fallthru
      _
    %v21 = vld [vmem:[%s0] sm:$0xf]
    %v22 = vld [vmem:[%s1] sm:$0xf]
    %v23 = vlaneseq
    %v24 = vand.u32 %v23, 127
    %v25 = vadd.s32 %v24, 128
    %s26 = smul.u32 0, 256
    %v27 = vstv %s26
    %v28 = vadd.s32 %v24, %v27
    %v29 = vadd.s32 %v25, %v27
    %v30 = vld [vmem:[%s2] sm:$0x3]
    %v31 = vld [vmem:[%s3] sm:$0x3]
    %v32 = vld [vmem:[%s4] sm:$0x3]
    %v33 = vmul.u32 %v31, 16
    %34 = vset.pattern.permute.xlu0 0
    %35 = vperm.xlu0 %34, %v33
    %v36 = vpop.permute.xlu0 %35
    %vm37 = vcmp.lt.s32.totalorder %v28, %v36
    %vm38 = vcmp.lt.s32.totalorder %v29, %v36
    %v39 = vlaneseq
    %v40 = vshrl.u32 %v39, 7
    %v41 = vsub.s32 0, %v40
    %v42 = vrot.slane %v30, %v41
    %v43 = vlaneseq
    %v44 = vshrl.u32 %v43, 7
    %v45 = vsub.s32 1, %v44
    %v46 = vrot.slane %v30, %v45
    %47 = vset.pattern.permute.xlu0 0
    %48 = vperm.xlu0 %47, %v32
    %v49 = vpop.permute.xlu0 %48
    %vm50 = vcmp.lt.s32.totalorder %v42, %v49
    %vm51 = vcmp.lt.s32.totalorder %v46, %v49
    %vm52 = vmand %vm37, %vm50
    %vm53 = vmand %vm38, %vm51
    %v54 = vlog2.pop %v21
    %v55 = vmul.f32 %v54, 0.6931472
    %v56 = vmax.f32 %v55, -100.0
    %v57 = vsub.f32 1.0, %v21
    %v58 = vlog2.pop %v57
    %v59 = vmul.f32 %v58, 0.6931472
    %v60 = vmax.f32 %v59, -100.0
    %v61 = vsub.f32 %v56, %v60
    %v62 = vmul.f32 %v22, %v61
    %v63 = vadd.f32 %v62, %v60
    %v66 = vunpack.c.l.s4 1983009808
    %v67 = vunpack.c.0.s8 %v66
    %v68 = vlaneseq
    %v69 = vshrl.u32 %v68, 7
    %v70 = vsub.s32 %v67, %v69
    %v71 = vrot.slane %v63, %v70
    %v72 = vcombine.high %v71, %v71
    %v75 = vsel %vm52, %v71, 0.0
    %v76 = vsel %vm53, %v72, 0.0
    %vm77 = vcmask 1041408
    %v78 = vsel %vm77, %v75, 0.0
    %v79 = vsel %vm77, %v76, 0.0
    %v80 = vadd.f32 %v78, %v79
    %81 = vadd.xlane.f32.xlu0 %v80
    %v82 = vpop.xlane.xlu0 %81
    %v83 = vrot.slane %v82, 4
    %v84 = vadd.f32 %v82, %v83
    %v85 = vrot.slane %v84, 2
    %v86 = vadd.f32 %v84, %v85
    %v87 = vrot.slane %v86, 1
    %v88 = vadd.f32 %v86, %v87
    %s89 = vtos %v88
    %s90 = scalar_lea.smem [#allocation2], 0
    %91 = sst [smem:[%s90]] %s89
    // Predicated region
    $region22: #{cross_entropy_perm_loss.1} parent=1 // pred_check
      _
    $region23: #{cross_entropy_perm_loss.1} parent=1 // pred_check_branch
      %93 = sbr.rel (0) target = $region25
    $region24: #{cross_entropy_perm_loss.1} parent=1 // pred_region
      %s95 = ssub.s32 16, 16
      %96 = vsyncadd [#allocation3], %s95
      %99 = dma.smem_to_hbm [#allocation2], 16, %s5, [#allocation3]
    $region25: #{cross_entropy_perm_loss.1} parent=1 // pred_fallthru
      _
    // Predicated region
    $region26: #{cross_entropy_perm_loss.1} parent=1 // pred_check
      _
    $region27: #{cross_entropy_perm_loss.1} parent=1 // pred_check_branch
      %101 = sbr.rel (0) target = $region29
    $region28: #{cross_entropy_perm_loss.1} parent=1 // pred_region
      %102 = dma.done [#allocation3], 16
    $region29: #{cross_entropy_perm_loss.1} parent=1 // pred_fallthru
      _
    %103 = sfence
    %104 = vsyncpa [#allocation3], 1

</llo_original>
